<compile_context>
chip_gen: v7x
topology: tpu7x:2x2x1
jax: 0.10.0
libtpu: 0.0.40
codegen_flags: <defaults>
</compile_context>

<pallas_src>
import math

import jax
import jax.numpy as jnp
from jax.experimental import pallas as pl
from jax.experimental.pallas import tpu as pltpu


def _content_loss_kernel(x_ref, t_ref, psum_ref, acc_ref):
    # x_ref:    (B, TILE_ROWS, 128)   input tile, native dtype
    # t_ref:    (1, TILE_ROWS, 128)   target tile, native dtype
    # psum_ref: (1, 8, 128) f32       per-slice partial sum (scalar broadcast)
    # acc_ref:  (8, 128) f32          running partial accumulator (VMEM scratch)
    i = pl.program_id(1)

    @pl.when(i == 0)
    def _init():
        acc_ref[...] = jnp.zeros_like(acc_ref)

    B = x_ref.shape[0]
    rows = x_ref.shape[1]

    # Dense batch sum over the leading axis (pure VPU adds, full vregs).
    s = jnp.sum(x_ref[...].astype(jnp.float32), axis=0)           # (rows, 128)
    d = s - jnp.float32(B) * t_ref[0].astype(jnp.float32)         # (rows, 128)
    sq = d * d

    # Tiling-aligned partial reduce into the small (8, 128) accumulator.
    acc_ref[...] += sq.reshape(rows // 8, 8, 128).sum(axis=0)

    @pl.when(i == pl.num_programs(1) - 1)
    def _finalize():
        # One cross-lane (XLU) reduction per slice, only in the epilogue.
        total = jnp.sum(acc_ref[...])
        psum_ref[...] = jnp.broadcast_to(total, psum_ref.shape)


def _sublane_multiple(itemsize):
    # Second-minor (sublane) tiling: f32 -> 8, bf16/f16 -> 16, int8/fp8 -> 32.
    return 8 * max(1, 4 // int(itemsize))


def _num_tensorcores():
    # Among v5e / v6e / v7x, only v7x exposes 2 TensorCores to one Pallas grid.
    try:
        kind = jax.devices()[0].device_kind.lower()
        if "v7" in kind:
            return 2
    except Exception:
        pass
    return 1


def content_loss_forward(x, target, *, tile_rows=None, num_slices=None,
                         vmem_budget_bytes=16 << 20):
    """Reproduces ContentLoss.forward: returns (input, loss)."""
    B = x.shape[0]
    N = math.prod(x.shape[1:])
    assert math.prod(target.shape) == N, "target must match input.mean(0) shape"

    # Stream the native dtype; the f32 upcast happens inside the kernel.
    x2 = x.reshape(B, N)
    t2 = target.reshape(1, N)
    itemsize = jnp.dtype(x2.dtype).itemsize
    sub = _sublane_multiple(itemsize)

    n_rows = -(-N // 128)
    rows_needed = ((n_rows + sub - 1) // sub) * sub

    if tile_rows is None:
        # Largest tile whose double-buffered (x + t) streaming footprint fits
        # the VMEM budget.
        per_row = 2 * (B + 1) * 128 * itemsize
        tile_rows = vmem_budget_bytes // per_row
    tile_rows = max(sub, (int(tile_rows) // sub) * sub)
    tile_rows = min(tile_rows, rows_needed)

    total_tiles = -(-rows_needed // tile_rows)
    if num_slices is None:
        # Leading "parallel" axis: shards the stream across v7x's 2 TCs;
        # stays 1 (no extra padding / epilogue) on single-core chips.
        num_slices = _num_tensorcores()
    num_slices = max(1, min(int(num_slices), total_tiles))
    tiles_per_slice = -(-total_tiles // num_slices)

    rows_pad = num_slices * tiles_per_slice * tile_rows
    n_pad = rows_pad * 128
    if n_pad != N:
        # Zero padding contributes nothing to sum((sum_b x - B*t)^2).
        x2 = jnp.pad(x2, ((0, 0), (0, n_pad - N)))
        t2 = jnp.pad(t2, ((0, 0), (0, n_pad - N)))
    x3 = x2.reshape(B, rows_pad, 128)
    t3 = t2.reshape(1, rows_pad, 128)

    in_idx = lambda s, i: (0, s * tiles_per_slice + i, 0)

    # vmem_limit from the actual double-buffered footprint (+ headroom).
    x_buf = B * tile_rows * 128 * itemsize
    t_buf = tile_rows * 128 * itemsize
    out_buf = 8 * 128 * 4
    footprint = 2 * (x_buf + t_buf) + 2 * out_buf + out_buf  # bufs + acc scratch
    vmem_limit = int(max(footprint + (4 << 20), 16 << 20))

    partials = pl.pallas_call(
        _content_loss_kernel,
        out_shape=jax.ShapeDtypeStruct((num_slices, 8, 128), jnp.float32),
        grid_spec=pltpu.PrefetchScalarGridSpec(
            num_scalar_prefetch=0,
            grid=(num_slices, tiles_per_slice),
            in_specs=[
                pl.BlockSpec((B, tile_rows, 128), in_idx),
                pl.BlockSpec((1, tile_rows, 128), in_idx),
            ],
            out_specs=pl.BlockSpec((1, 8, 128), lambda s, i: (s, 0, 0)),
            scratch_shapes=[pltpu.VMEM((8, 128), jnp.float32)],
        ),
        compiler_params=pltpu.CompilerParams(
            dimension_semantics=("parallel", "arbitrary"),
            vmem_limit_bytes=vmem_limit,
        ),
        cost_estimate=pl.CostEstimate(
            flops=(B + 3) * n_pad,
            transcendentals=0,
            bytes_accessed=(B + 1) * n_pad * itemsize + num_slices * 8 * 128 * 4,
        ),
    )(x3, t3)

    # loss = sum((sum_b x - B*t)^2) / (B^2 * N)  ==  mse(mean_b x, t)
    loss = jnp.sum(partials[:, 0, 0]) / jnp.float32(B * B) / jnp.float32(N)

    # Module returns `input` unchanged; `loss` is what it stores in self.loss.
    return x, loss


if __name__ == "__main__":
    key = jax.random.PRNGKey(0)
    kx, kt, kx2, kt2, kx3, kt3 = jax.random.split(key, 6)

    # --- Test 1: f32, small NCHW, auto tiling (single dense tile, no padding).
    B, C, H, W = 2, 4, 16, 16
    x = jax.random.normal(kx, (B, C, H, W), dtype=jnp.float32)
    target = jax.random.normal(kt, (C, H, W), dtype=jnp.float32)

    out, loss = content_loss_forward(x, target)
    out = jax.block_until_ready(out)
    loss = jax.block_until_ready(loss)

    ref_loss = jnp.mean((x.mean(axis=0) - target) ** 2)
    assert out.shape == x.shape and bool(jnp.all(out == x)), "pass-through mismatch"
    assert jnp.allclose(loss, ref_loss, rtol=1e-5, atol=1e-6), (loss, ref_loss)

    # --- Test 2: bf16 streamed natively (kernel upcasts to f32), padded tail.
    B2, C2, H2, W2 = 4, 8, 8, 8
    xb = jax.random.normal(kx2, (B2, C2, H2, W2), dtype=jnp.float32).astype(jnp.bfloat16)
    tb = jax.random.normal(kt2, (C2, H2, W2), dtype=jnp.float32).astype(jnp.bfloat16)

    out2, loss2 = content_loss_forward(xb, tb)
    loss2 = jax.block_until_ready(loss2)

    ref_loss2 = jnp.mean(
        (xb.astype(jnp.float32).mean(axis=0) - tb.astype(jnp.float32)) ** 2
    )
    assert out2.shape == xb.shape
    assert jnp.allclose(loss2, ref_loss2, rtol=1e-4, atol=1e-6), (loss2, ref_loss2)

    # --- Test 3: multi-tile, 2-slice pipelined reduction path (explicit tiling).
    B3, C3, H3, W3 = 2, 8, 32, 32
    xc = jax.random.normal(kx3, (B3, C3, H3, W3), dtype=jnp.float32)
    tc = jax.random.normal(kt3, (C3, H3, W3), dtype=jnp.float32)

    out3, loss3 = content_loss_forward(xc, tc, tile_rows=16, num_slices=2)
    loss3 = jax.block_until_ready(loss3)

    ref_loss3 = jnp.mean((xc.mean(axis=0) - tc) ** 2)
    assert out3.shape == xc.shape
    assert jnp.allclose(loss3, ref_loss3, rtol=1e-5, atol=1e-6), (loss3, ref_loss3)

    print("KERNEL_OK")
</pallas_src>

<mosaic_0001>
module attributes {stable_mosaic.version = 11 : i64} {
  func.func @_content_loss_kernel(%arg0: i32, %arg1: i32, %arg2: memref<2x8x128xf32, #tpu.memory_space<vmem>>, %arg3: memref<1x8x128xf32, #tpu.memory_space<vmem>>, %arg4: memref<1x8x128xf32, #tpu.memory_space<vmem>>, %arg5: memref<8x128xf32, #tpu.memory_space<vmem>>) attributes {dimension_semantics = [#tpu.dimension_semantics<parallel>, #tpu.dimension_semantics<arbitrary>], iteration_bounds = array<i64: 1, 1>, scalar_prefetch = 0 : i64, scratch_operands = 1 : i64, tpu.core_type = #tpu.core_type<tc>, window_params = [{transform_indices = @transform_0, window_bounds = array<i64: 2, 8, 128>}, {transform_indices = @transform_1, window_bounds = array<i64: 1, 8, 128>}, {transform_indices = @transform_2, window_bounds = array<i64: 1, 8, 128>}]} {
    %c0_i32 = arith.constant 0 : i32
    %0 = arith.cmpi eq, %arg1, %c0_i32 : i32
    %1 = arith.extui %0 : i1 to i32
    %c0_i32_0 = arith.constant 0 : i32
    %2 = arith.cmpi ne, %1, %c0_i32_0 : i32
    scf.if %2 {
      %cst_14 = arith.constant 0.000000e+00 : f32
      %19 = vector.broadcast %cst_14 : f32 to vector<8x128xf32>
      %c0_15 = arith.constant 0 : index
      %c0_16 = arith.constant 0 : index
      %20 = vector.load %arg5[%c0_15, %c0_16] : memref<8x128xf32, #tpu.memory_space<vmem>>, vector<8x128xf32>
      tpu.vector_store %arg5[%c0_15, %c0_16], %19 {strides = array<i32>} : memref<8x128xf32, #tpu.memory_space<vmem>>, vector<8x128xf32>,
    } else {
    }
    %c0 = arith.constant 0 : index
    %c0_1 = arith.constant 0 : index
    %c0_2 = arith.constant 0 : index
    %3 = vector.load %arg2[%c0, %c0_1, %c0_2] : memref<2x8x128xf32, #tpu.memory_space<vmem>>, vector<2x8x128xf32>
    %cst = arith.constant dense<0.000000e+00> : vector<8x128xf32>
    %4 = vector.multi_reduction <add>, %3, %cst [0] : vector<2x8x128xf32> to vector<8x128xf32>
    %c0_3 = arith.constant 0 : index
    %c0_4 = arith.constant 0 : index
    %c0_5 = arith.constant 0 : index
    %5 = vector.load %arg3[%c0_3, %c0_4, %c0_5] : memref<1x8x128xf32, #tpu.memory_space<vmem>>, vector<1x8x128xf32>
    %6 = vector.shape_cast %5 : vector<1x8x128xf32> to vector<8x128xf32>
    %cst_6 = arith.constant 2.000000e+00 : f32
    %7 = vector.broadcast %cst_6 : f32 to vector<8x128xf32>
    %8 = arith.mulf %7, %6 : vector<8x128xf32>
    %9 = arith.subf %4, %8 : vector<8x128xf32>
    %10 = arith.mulf %9, %9 : vector<8x128xf32>
    %c0_7 = arith.constant 0 : index
    %c0_8 = arith.constant 0 : index
    %11 = vector.load %arg5[%c0_7, %c0_8] : memref<8x128xf32, #tpu.memory_space<vmem>>, vector<8x128xf32>
    %12 = vector.shape_cast %10 : vector<8x128xf32> to vector<1x8x128xf32>
    %cst_9 = arith.constant dense<0.000000e+00> : vector<8x128xf32>
    %13 = vector.multi_reduction <add>, %12, %cst_9 [0] : vector<1x8x128xf32> to vector<8x128xf32>
    %14 = arith.addf %11, %13 : vector<8x128xf32>
    %c0_10 = arith.constant 0 : index
    %c0_11 = arith.constant 0 : index
    %15 = vector.load %arg5[%c0_10, %c0_11] : memref<8x128xf32, #tpu.memory_space<vmem>>, vector<8x128xf32>
    tpu.vector_store %arg5[%c0_10, %c0_11], %14 {strides = array<i32>} : memref<8x128xf32, #tpu.memory_space<vmem>>, vector<8x128xf32>,
    %c0_i32_12 = arith.constant 0 : i32
    %16 = arith.cmpi eq, %arg1, %c0_i32_12 : i32
    %17 = arith.extui %16 : i1 to i32
    %c0_i32_13 = arith.constant 0 : i32
    %18 = arith.cmpi ne, %17, %c0_i32_13 : i32
    scf.if %18 {
      %c0_14 = arith.constant 0 : index
      %c0_15 = arith.constant 0 : index
      %19 = vector.load %arg5[%c0_14, %c0_15] : memref<8x128xf32, #tpu.memory_space<vmem>>, vector<8x128xf32>
      %20 = vector.shape_cast %19 : vector<8x128xf32> to vector<1x8x128xf32>
      %cst_16 = arith.constant dense<0.000000e+00> : vector<1xf32>
      %21 = vector.multi_reduction <add>, %20, %cst_16 [1, 2] : vector<1x8x128xf32> to vector<1xf32>
      %22 = vector.shape_cast %21 : vector<1xf32> to vector<1x1x1xf32>
      %23 = vector.extract %22[0, 0, 0] : f32 from vector<1x1x1xf32>
      %24 = vector.broadcast %23 : f32 to vector<1x8x128xf32>
      %c0_17 = arith.constant 0 : index
      %c0_18 = arith.constant 0 : index
      %c0_19 = arith.constant 0 : index
      %25 = vector.load %arg4[%c0_17, %c0_18, %c0_19] : memref<1x8x128xf32, #tpu.memory_space<vmem>>, vector<1x8x128xf32>
      tpu.vector_store %arg4[%c0_17, %c0_18, %c0_19], %24 {strides = array<i32>} : memref<1x8x128xf32, #tpu.memory_space<vmem>>, vector<1x8x128xf32>,
    } else {
    }
    return
  }
  func.func @transform_0(%arg0: i32, %arg1: i32) -> (i32, i32, i32) {
    %c1_i32 = arith.constant 1 : i32
    %0 = arith.muli %arg0, %c1_i32 : i32
    %1 = arith.addi %0, %arg1 : i32
    %c0_i32 = arith.constant 0 : i32
    %c0_i32_0 = arith.constant 0 : i32
    %c0_i32_1 = arith.constant 0 : i32
    return %c0_i32, %1, %c0_i32_0 : i32, i32, i32
  }
  func.func @transform_1(%arg0: i32, %arg1: i32) -> (i32, i32, i32) {
    %c1_i32 = arith.constant 1 : i32
    %0 = arith.muli %arg0, %c1_i32 : i32
    %1 = arith.addi %0, %arg1 : i32
    %c0_i32 = arith.constant 0 : i32
    %c0_i32_0 = arith.constant 0 : i32
    %c0_i32_1 = arith.constant 0 : i32
    return %c0_i32, %1, %c0_i32_0 : i32, i32, i32
  }
  func.func @transform_2(%arg0: i32, %arg1: i32) -> (i32, i32, i32) {
    %c0_i32 = arith.constant 0 : i32
    %c0_i32_0 = arith.constant 0 : i32
    %c0_i32_1 = arith.constant 0 : i32
    return %arg0, %c0_i32, %c0_i32_0 : i32, i32, i32
  }
}

</mosaic_0001>

<llo_original>
// kernel: tpu_custom_call.1
$region0: #{tpu_custom_call.1}
  #allocation0 [shape = 'u32[]', space=smem, size = 0x4, offset = 0x4, fixed_abs, tag = 'smem constant byte address 0x4 - core index']
  #allocation1 [shape = 'u32[144,128]{1,0:T(1,128)}', space=vmem, size = 0x12000, scoped, tag = 'internal scratch']
  #allocation2 [shape = 'f32[8,128]{1,0:T(8,128)}', space=vmem, size = 0x1000, scoped, tag = 'scratch operand']
  %s0 = inlined_call_operand.hbm [shape: f32[2,8,128], index: 0, kind: input, shape index: {}]
  %s1 = inlined_call_operand.hbm [shape: f32[1,8,128], index: 1, kind: input, shape index: {}]
  %s2 = inlined_call_operand.hbm [shape: f32[1,8,128], index: 2, kind: output, shape index: {}]
  %s3 = sld [smem:[#allocation0]]
  $region34: #{tpu_custom_call.1} parent=0
    _
  %s5 = ssub.s32 1, %s3
  %s6 = scalar_select 0, %s5, %s3
  $region1: #{tpu_custom_call.1} parent=0
    #allocation3 [shape = 'u8[8192]{0}', space=vmem, size = 0x2000, scoped, tag = 'input window, operand 0, single buffered']
    #allocation4 [shape = 's32[1]{0}', space=sflag, size = 0x4, scoped, tag = 'scoped memory for tpu_custom_call.1']
    #allocation5 [shape = 's32[1]{0}', space=sflag, size = 0x4, scoped, tag = 'scoped memory for tpu_custom_call.1']
    #allocation6 [shape = 'u8[4096]{0}', space=vmem, size = 0x1000, scoped, tag = 'input window, operand 1, single buffered']
    #allocation7 [shape = 's32[1]{0}', space=sflag, size = 0x4, scoped, tag = 'scoped memory for tpu_custom_call.1']
    #allocation8 [shape = 'u8[4096]{0}', space=vmem, size = 0x1000, scoped, tag = 'output window, operand 0, single buffered']
    %7 = vsyncpa [#allocation4], 0
    %8 = vsyncpa [#allocation7], 0
    %9 = vsyncpa [#allocation5], 0
    // Predicated region
    $region2: #{tpu_custom_call.1} parent=1 // pred_check
      _
    $region3: #{tpu_custom_call.1} parent=1 // pred_check_branch
      %11 = sbr.rel (0) target = $region5
    $region4: #{tpu_custom_call.1} parent=1 // pred_region
      %s12 = sadd.s32 0, 0
      %s14 = ssub.s32 256, 256
      %15 = vsyncadd [#allocation4], %s14
      %s16 = smul.addr %s12, 128
      %s17 = scalar_lea.hbm %s0, %s16
      %s18 = sshll.u32 [#allocation3], 4
      %s19 = int_to_ptr.vmem [resolvable:$true] %s18
      %24 = dma.hbm_to_vmem [thread:$0]  %s17, 256, %s19, [#allocation4], 128, 128, 8
    $region5: #{tpu_custom_call.1} parent=1 // pred_fallthru
      _
    // Predicated region
    $region6: #{tpu_custom_call.1} parent=1 // pred_check
      _
    $region7: #{tpu_custom_call.1} parent=1 // pred_check_branch
      %26 = sbr.rel (0) target = $region9
    $region8: #{tpu_custom_call.1} parent=1 // pred_region
      %s27 = sadd.s32 0, 0
      %s29 = ssub.s32 128, 128
      %30 = vsyncadd [#allocation7], %s29
      %s31 = smul.addr %s27, 128
      %s32 = scalar_lea.hbm %s1, %s31
      %s34 = sshll.u32 [#allocation6], 4
      %s35 = int_to_ptr.vmem [resolvable:$true] %s34
      %37 = dma.hbm_to_vmem [thread:$0]  %s32, 128, %s35, [#allocation7]
    $region9: #{tpu_custom_call.1} parent=1 // pred_fallthru
      _
    // Predicated region
    $region10: #{tpu_custom_call.1} parent=1 // pred_check
      _
    $region11: #{tpu_custom_call.1} parent=1 // pred_check_branch
      %39 = sbr.rel (0) target = $region13
    $region12: #{tpu_custom_call.1} parent=1 // pred_region
      %40 = dma.done [#allocation4], 256
    $region13: #{tpu_custom_call.1} parent=1 // pred_fallthru
      _
    // Predicated region
    $region14: #{tpu_custom_call.1} parent=1 // pred_check
      _
    $region15: #{tpu_custom_call.1} parent=1 // pred_check_branch
      %42 = sbr.rel (0) target = $region17
    $region16: #{tpu_custom_call.1} parent=1 // pred_region
      %43 = dma.done [#allocation7], 128
    $region17: #{tpu_custom_call.1} parent=1 // pred_fallthru
      _
    %s44 = sadd.s32 0, 0
    %s45 = sadd.s32 0, 0
    %p46 = scmp.eq.s32.totalorder 0, 0
    // Predicated region
    $region18: #{tpu_custom_call.1} parent=1 // pred_check
      %p47 = pneg %p46
    $region19: #{tpu_custom_call.1} parent=1 // pred_check_branch
      %49 = sbr.rel (%p47) target = $region21
    $region20: #{tpu_custom_call.1} parent=1 // pred_region
      %50 = vst [vmem:[#allocation2] sm:$0xff] 0.0
    $region21: #{tpu_custom_call.1} parent=1 // pred_fallthru
      _
    %v51 = vld [vmem:[#allocation3] sm:$0xff]
    %v52 = vld [vmem:[#allocation3 + $0x8] sm:$0xff]
    %v53 = vadd.f32 %v51, %v52
    %v54 = vld [vmem:[#allocation6] sm:$0xff]
    %v55 = vmul.f32 %v54, 2.0
    %v56 = vsub.f32 %v53, %v55
    %v57 = vmul.f32 %v56, %v56
    %v58 = vld [vmem:[#allocation2] sm:$0xff]
    %v59 = vadd.f32 %v57, 0.0
    %v60 = vadd.f32 %v58, %v59
    %61 = vst [vmem:[#allocation2] sm:$0xff] %v60
    // Predicated region
    $region22: #{tpu_custom_call.1} parent=1 // pred_check
      %p62 = pneg %p46
    $region23: #{tpu_custom_call.1} parent=1 // pred_check_branch
      %64 = sbr.rel (%p62) target = $region25
    $region24: #{tpu_custom_call.1} parent=1 // pred_region
      %v65 = vld [vmem:[#allocation2] sm:$0xff]
      %66 = vadd.xlane.f32.xlu0 %v65
      %v67 = vpop.xlane.xlu0 %66
      %v68 = vrot.slane %v67, 4
      %v69 = vadd.f32 %v67, %v68
      %v70 = vrot.slane %v69, 2
      %v71 = vadd.f32 %v69, %v70
      %v72 = vrot.slane %v71, 1
      %v73 = vadd.f32 %v71, %v72
      %s74 = vtos %v73
      %v75 = vstv %s74
      %76 = vst [vmem:[#allocation8] sm:$0xff] %v75
    $region25: #{tpu_custom_call.1} parent=1 // pred_fallthru
      _
    // Predicated region
    $region26: #{tpu_custom_call.1} parent=1 // pred_check
      _
    $region27: #{tpu_custom_call.1} parent=1 // pred_check_branch
      %78 = sbr.rel (0) target = $region29
    $region28: #{tpu_custom_call.1} parent=1 // pred_region
      %s80 = ssub.s32 128, 128
      %81 = vsyncadd [#allocation5], %s80
      %s83 = sshll.u32 [#allocation8], 4
      %s84 = int_to_ptr.vmem [resolvable:$true] %s83
      %86 = dma.vmem_to_hbm [thread:$0]  %s84, 128, %s2, [#allocation5]
    $region29: #{tpu_custom_call.1} parent=1 // pred_fallthru
      _
    // Predicated region
    $region30: #{tpu_custom_call.1} parent=1 // pred_check
      _
    $region31: #{tpu_custom_call.1} parent=1 // pred_check_branch
      %88 = sbr.rel (0) target = $region33
    $region32: #{tpu_custom_call.1} parent=1 // pred_region
      %89 = dma.done [#allocation5], 128
    $region33: #{tpu_custom_call.1} parent=1 // pred_fallthru
      _
    %90 = vsyncpa [#allocation4], 1
    %91 = vsyncpa [#allocation7], 1
    %92 = vsyncpa [#allocation5], 1

</llo_original>
